<compile_context>
chip_gen: v6e
topology: v6e:2x2x1
jax: 0.10.0
libtpu: 0.0.40
codegen_flags: <defaults>
</compile_context>

<pallas_src>
import numpy as np
import jax
import jax.numpy as jnp
from jax.experimental import pallas as pl
from jax.experimental.pallas import tpu as pltpu


def diffusion_trainer_kernel(x0_ref, noise_ref, a_ref, s_ref, temb_ref, wbd_ref,
                             out_ref):
    # Whole-tile vectorized body; no per-batch unrolling.
    x0 = x0_ref[...].astype(jnp.float32)
    noise = noise_ref[...].astype(jnp.float32)

    # forward diffusion q(x_t | x_0):  extract() columns broadcast over lanes
    x_t = a_ref[...] * x0 + s_ref[...] * noise

    # stand-in denoiser: block-diagonal 1x1-conv channel mix (MXU) + time emb
    eps_pred = jnp.dot(wbd_ref[...], x_t,
                       preferred_element_type=jnp.float32) + temb_ref[...]

    # F.mse_loss(pred, noise, reduction='none')
    diff = eps_pred - noise
    out_ref[...] = (diff * diff).astype(out_ref.dtype)


def _vmem_budget_bytes():
    """Generation-aware VMEM budget (v5e/v6e: 128 MiB physical, v7x: 64 MiB/TC)."""
    try:
        cap = pltpu.get_tpu_info().vmem_capacity_bytes
    except Exception:
        cap = 64 * 1024 * 1024  # conservative (v7x-sized) fallback
    return min(cap // 2, 32 * 1024 * 1024)


def _choose_b_tile(B, C, HW, bytes_per_elem, vmem_budget, min_grid=4):
    """Pick the largest batch tile that (a) divides B, (b) keeps rows = b_tile*C
    sublane-aligned (unless it spans the whole batch), (c) fits a double-buffered
    VMEM budget, and (d) preferably leaves >=min_grid (then >=2) grid steps so the
    pipeline overlaps and v7x's two TensorCores both get work."""
    divisors = [d for d in range(1, B + 1) if B % d == 0]

    def rows_ok(d):
        return (d * C) % 8 == 0 or d == B

    def fits(d):
        rows = d * C
        block_bytes = rows * HW * bytes_per_elem
        # x0 + noise + out double-buffered, plus the resident block-diag weights.
        return 3 * 2 * block_bytes + rows * rows * 4 <= vmem_budget

    legal = [d for d in divisors if rows_ok(d) and fits(d)]
    if not legal:
        legal = [d for d in divisors if fits(d)] or [1]
    for g in (min_grid, 2):
        pref = [d for d in legal if B // d >= g]
        if pref:
            return max(pref)
    return max(legal)


def gaussian_diffusion_trainer_forward(x_0, t, noise, sab, somab, w_mix, temb_table):
    """x_0, noise: (B, C, H, W) NCHW; t: (B,) int32; sab/somab: (T,) f32."""
    B, C, H, W = x_0.shape
    HW = H * W
    HW_pad = ((HW + 127) // 128) * 128          # lane-dense last dim
    dtype = x_0.dtype
    bpe = jnp.dtype(dtype).itemsize

    x0_flat = x_0.reshape(B * C, HW)
    noise_flat = noise.reshape(B * C, HW)
    if HW_pad != HW:
        pad = ((0, 0), (0, HW_pad - HW))
        x0_flat = jnp.pad(x0_flat, pad)
        noise_flat = jnp.pad(noise_flat, pad)

    # extract(sqrt_alphas_bar, t) / extract(sqrt_one_minus_alphas_bar, t) and the
    # gathered per-timestep embedding, as (B*C, 1) columns (broadcast over lanes).
    a_col = jnp.broadcast_to(sab[t].astype(jnp.float32)[:, None], (B, C)).reshape(B * C, 1)
    s_col = jnp.broadcast_to(somab[t].astype(jnp.float32)[:, None], (B, C)).reshape(B * C, 1)
    temb_g = temb_table[t].astype(jnp.float32).reshape(B * C, 1)

    vmem_budget = _vmem_budget_bytes()
    b_tile = _choose_b_tile(B, C, HW_pad, bpe, vmem_budget)
    rows = b_tile * C
    grid = (B // b_tile,)

    # Block-diagonal channel-mix weight so a single MXU matmul handles the tile.
    w_bd = jnp.kron(jnp.eye(b_tile, dtype=jnp.float32), w_mix.astype(jnp.float32))

    grid_spec = pltpu.PrefetchScalarGridSpec(
        num_scalar_prefetch=0,
        grid=grid,
        in_specs=[
            pl.BlockSpec((rows, HW_pad), lambda bt: (bt, 0)),   # x_0
            pl.BlockSpec((rows, HW_pad), lambda bt: (bt, 0)),   # noise
            pl.BlockSpec((rows, 1), lambda bt: (bt, 0)),        # sqrt_alphas_bar[t]
            pl.BlockSpec((rows, 1), lambda bt: (bt, 0)),        # sqrt_one_minus_alphas_bar[t]
            pl.BlockSpec((rows, 1), lambda bt: (bt, 0)),        # gathered time embedding
            pl.BlockSpec((rows, rows), lambda bt: (0, 0)),      # block-diag mix W (resident)
        ],
        out_specs=pl.BlockSpec((rows, HW_pad), lambda bt: (bt, 0)),
    )

    cost = pl.CostEstimate(
        flops=2 * B * b_tile * C * C * HW_pad + 6 * B * C * HW_pad,
        transcendentals=0,
        bytes_accessed=3 * B * C * HW_pad * bpe + 3 * B * C * 4
                       + (B // b_tile) * rows * rows * 4,
    )

    out = pl.pallas_call(
        diffusion_trainer_kernel,
        out_shape=jax.ShapeDtypeStruct((B * C, HW_pad), dtype),
        grid_spec=grid_spec,
        compiler_params=pltpu.CompilerParams(
            dimension_semantics=("parallel",),       # independent batch tiles
            vmem_limit_bytes=vmem_budget + (8 << 20),
        ),
        cost_estimate=cost,
    )(x0_flat, noise_flat, a_col, s_col, temb_g, w_bd)

    if HW_pad != HW:
        out = out[:, :HW]
    return out.reshape(B, C, H, W)


if __name__ == "__main__":
    key = jax.random.PRNGKey(0)
    B, C, H, W = 2, 4, 16, 16
    T = 100
    beta_1, beta_T = 1e-4, 0.02

    # __init__ buffers (computed in float64 like torch .double(), cast to f32)
    betas = np.linspace(beta_1, beta_T, T, dtype=np.float64)
    alphas = 1.0 - betas
    alphas_bar = np.cumprod(alphas)
    sab = jnp.asarray(np.sqrt(alphas_bar), dtype=jnp.float32)
    somab = jnp.asarray(np.sqrt(1.0 - alphas_bar), dtype=jnp.float32)

    # deterministic inputs / synthetic model parameters
    k1, k2, k3, k4, k5 = jax.random.split(key, 5)
    x0 = jax.random.normal(k1, (B, C, H, W), dtype=jnp.float32)
    t = jax.random.randint(k2, (B,), 0, T, dtype=jnp.int32)         # torch.randint(T, (B,))
    noise = jax.random.normal(k3, (B, C, H, W), dtype=jnp.float32)  # torch.randn_like
    w_mix = jax.random.normal(k4, (C, C), dtype=jnp.float32) / np.sqrt(C)
    temb_table = jax.random.normal(k5, (T, C), dtype=jnp.float32) * 0.1

    loss = gaussian_diffusion_trainer_forward(x0, t, noise, sab, somab, w_mix, temb_table)
    jax.block_until_ready(loss)

    # plain-JAX reference
    a = sab[t].reshape(B, 1, 1, 1)
    s = somab[t].reshape(B, 1, 1, 1)
    x_t = a * x0 + s * noise
    eps = jnp.einsum("oc,bchw->bohw", w_mix, x_t,
                     precision=jax.lax.Precision.HIGHEST) + temb_table[t].reshape(B, C, 1, 1)
    ref = (eps - noise) ** 2
    assert loss.shape == (B, C, H, W) and loss.dtype == jnp.float32
    assert jnp.allclose(loss, ref, atol=1e-4), float(jnp.max(jnp.abs(loss - ref)))

    print("KERNEL_OK")
</pallas_src>

<mosaic_0001>
module attributes {stable_mosaic.version = 11 : i64} {
  func.func @diffusion_trainer_kernel(%arg0: i32, %arg1: memref<8x256xf32, #tpu.memory_space<vmem>>, %arg2: memref<8x256xf32, #tpu.memory_space<vmem>>, %arg3: memref<8x1xf32, #tpu.memory_space<vmem>>, %arg4: memref<8x1xf32, #tpu.memory_space<vmem>>, %arg5: memref<8x1xf32, #tpu.memory_space<vmem>>, %arg6: memref<8x8xf32, #tpu.memory_space<vmem>>, %arg7: memref<8x256xf32, #tpu.memory_space<vmem>>) attributes {dimension_semantics = [#tpu.dimension_semantics<parallel>], iteration_bounds = array<i64: 1>, scalar_prefetch = 0 : i64, scratch_operands = 0 : i64, tpu.core_type = #tpu.core_type<tc>, window_params = [{transform_indices = @transform_0, window_bounds = array<i64: 8, 256>}, {transform_indices = @transform_1, window_bounds = array<i64: 8, 256>}, {transform_indices = @transform_2, window_bounds = array<i64: 8, 1>}, {transform_indices = @transform_3, window_bounds = array<i64: 8, 1>}, {transform_indices = @transform_4, window_bounds = array<i64: 8, 1>}, {pipeline_mode = #tpu.pipeline_mode<synchronous>, transform_indices = @transform_5, window_bounds = array<i64: 8, 8>}, {transform_indices = @transform_6, window_bounds = array<i64: 8, 256>}]} {
    %c0 = arith.constant 0 : index
    %c0_0 = arith.constant 0 : index
    %0 = vector.load %arg1[%c0, %c0_0] : memref<8x256xf32, #tpu.memory_space<vmem>>, vector<8x256xf32>
    %c0_1 = arith.constant 0 : index
    %c0_2 = arith.constant 0 : index
    %1 = vector.load %arg2[%c0_1, %c0_2] : memref<8x256xf32, #tpu.memory_space<vmem>>, vector<8x256xf32>
    %c0_3 = arith.constant 0 : index
    %c0_4 = arith.constant 0 : index
    %2 = vector.load %arg3[%c0_3, %c0_4] : memref<8x1xf32, #tpu.memory_space<vmem>>, vector<8x1xf32>
    %3 = vector.broadcast %2 : vector<8x1xf32> to vector<8x256xf32>
    %4 = arith.mulf %3, %0 : vector<8x256xf32>
    %c0_5 = arith.constant 0 : index
    %c0_6 = arith.constant 0 : index
    %5 = vector.load %arg4[%c0_5, %c0_6] : memref<8x1xf32, #tpu.memory_space<vmem>>, vector<8x1xf32>
    %6 = vector.broadcast %5 : vector<8x1xf32> to vector<8x256xf32>
    %7 = arith.mulf %6, %1 : vector<8x256xf32>
    %8 = arith.addf %4, %7 : vector<8x256xf32>
    %c0_7 = arith.constant 0 : index
    %c0_8 = arith.constant 0 : index
    %9 = vector.load %arg6[%c0_7, %c0_8] : memref<8x8xf32, #tpu.memory_space<vmem>>, vector<8x8xf32>
    %cst = arith.constant dense<0.000000e+00> : vector<8x256xf32>
    %10 = tpu.matmul %9, %8, %cst {dimension_numbers = #tpu.dot_dimension_numbers<[1], [0], [0], [1], [0, 0, 1, 1], [], []>} : vector<8x8xf32>, vector<8x256xf32>, vector<8x256xf32> -> vector<8x256xf32>
    %c0_9 = arith.constant 0 : index
    %c0_10 = arith.constant 0 : index
    %11 = vector.load %arg5[%c0_9, %c0_10] : memref<8x1xf32, #tpu.memory_space<vmem>>, vector<8x1xf32>
    %12 = vector.broadcast %11 : vector<8x1xf32> to vector<8x256xf32>
    %13 = arith.addf %10, %12 : vector<8x256xf32>
    %14 = arith.subf %13, %1 : vector<8x256xf32>
    %15 = arith.mulf %14, %14 : vector<8x256xf32>
    %c0_11 = arith.constant 0 : index
    %c0_12 = arith.constant 0 : index
    %16 = vector.load %arg7[%c0_11, %c0_12] : memref<8x256xf32, #tpu.memory_space<vmem>>, vector<8x256xf32>
    tpu.vector_store %arg7[%c0_11, %c0_12], %15 {strides = array<i32>} : memref<8x256xf32, #tpu.memory_space<vmem>>, vector<8x256xf32>,
    return
  }
  func.func @transform_0(%arg0: i32) -> (i32, i32) {
    %c0_i32 = arith.constant 0 : i32
    %c0_i32_0 = arith.constant 0 : i32
    return %arg0, %c0_i32 : i32, i32
  }
  func.func @transform_1(%arg0: i32) -> (i32, i32) {
    %c0_i32 = arith.constant 0 : i32
    %c0_i32_0 = arith.constant 0 : i32
    return %arg0, %c0_i32 : i32, i32
  }
  func.func @transform_2(%arg0: i32) -> (i32, i32) {
    %c0_i32 = arith.constant 0 : i32
    %c0_i32_0 = arith.constant 0 : i32
    return %arg0, %c0_i32 : i32, i32
  }
  func.func @transform_3(%arg0: i32) -> (i32, i32) {
    %c0_i32 = arith.constant 0 : i32
    %c0_i32_0 = arith.constant 0 : i32
    return %arg0, %c0_i32 : i32, i32
  }
  func.func @transform_4(%arg0: i32) -> (i32, i32) {
    %c0_i32 = arith.constant 0 : i32
    %c0_i32_0 = arith.constant 0 : i32
    return %arg0, %c0_i32 : i32, i32
  }
  func.func @transform_5(%arg0: i32) -> (i32, i32) {
    %c0_i32 = arith.constant 0 : i32
    %c0_i32_0 = arith.constant 0 : i32
    %c0_i32_1 = arith.constant 0 : i32
    return %c0_i32, %c0_i32_0 : i32, i32
  }
  func.func @transform_6(%arg0: i32) -> (i32, i32) {
    %c0_i32 = arith.constant 0 : i32
    %c0_i32_0 = arith.constant 0 : i32
    return %arg0, %c0_i32 : i32, i32
  }
}

</mosaic_0001>

<llo_original>
// kernel: tpu_custom_call.1
$region0: #{tpu_custom_call.1}
  #allocation0 [shape = 'u32[]', space=smem, size = 0x4, offset = 0x4, fixed_abs, tag = 'smem constant byte address 0x4 - core index']
  #allocation1 [shape = 'u32[144,128]{1,0:T(1,128)}', space=vmem, size = 0x12000, scoped, tag = 'internal scratch']
  %s0 = inlined_call_operand.vmem [shape: f32[8,256], index: 0, kind: input, shape index: {}]
  %s1 = inlined_call_operand.hbm [shape: f32[8,256], index: 1, kind: input, shape index: {}]
  %s2 = inlined_call_operand.vmem [shape: f32[8,1], index: 2, kind: input, shape index: {}]
  %s3 = inlined_call_operand.vmem [shape: f32[8,1], index: 3, kind: input, shape index: {}]
  %s4 = inlined_call_operand.vmem [shape: f32[8,1], index: 4, kind: input, shape index: {}]
  %s5 = inlined_call_operand.vmem [shape: f32[8,8], index: 5, kind: input, shape index: {}]
  %s6 = inlined_call_operand.hbm [shape: f32[8,256], index: 6, kind: output, shape index: {}]
  %s7 = sld [smem:[#allocation0]]
  $region38: #{tpu_custom_call.1} parent=0
    _
  %s9 = ssub.s32 1, %s7
  %s10 = scalar_select 0, %s9, %s7
  $region1: #{tpu_custom_call.1} parent=0
    #allocation2 [shape = 'u8[8192]{0}', space=vmem, size = 0x2000, scoped, tag = 'input window, operand 1, single buffered']
    #allocation3 [shape = 's32[1]{0}', space=sflag, size = 0x4, scoped, tag = 'scoped memory for tpu_custom_call.1']
    #allocation4 [shape = 's32[1]{0}', space=sflag, size = 0x4, scoped, tag = 'scoped memory for tpu_custom_call.1']
    #allocation5 [shape = 'u8[8192]{0}', space=vmem, size = 0x2000, scoped, tag = 'output window, operand 0, single buffered']
    %11 = vsyncpa [#allocation3], 0
    %12 = vsyncpa [#allocation4], 0
    // Predicated region
    $region2: #{tpu_custom_call.1} parent=1 // pred_check
      _
    $region3: #{tpu_custom_call.1} parent=1 // pred_check_branch
      %14 = sbr.rel (0) target = $region5
    $region4: #{tpu_custom_call.1} parent=1 // pred_region
      _
    $region5: #{tpu_custom_call.1} parent=1 // pred_fallthru
      _
    // Predicated region
    $region6: #{tpu_custom_call.1} parent=1 // pred_check
      _
    $region7: #{tpu_custom_call.1} parent=1 // pred_check_branch
      %16 = sbr.rel (0) target = $region9
    $region8: #{tpu_custom_call.1} parent=1 // pred_region
      %s18 = ssub.s32 256, 256
      %19 = vsyncadd [#allocation3], %s18
      %s21 = sshll.u32 [#allocation2], 4
      %s22 = int_to_ptr.vmem [resolvable:$true] %s21
      %24 = dma.hbm_to_vmem [thread:$0]  %s1, 256, %s22, [#allocation3]
    $region9: #{tpu_custom_call.1} parent=1 // pred_fallthru
      _
    // Predicated region
    $region10: #{tpu_custom_call.1} parent=1 // pred_check
      _
    $region11: #{tpu_custom_call.1} parent=1 // pred_check_branch
      %26 = sbr.rel (0) target = $region13
    $region12: #{tpu_custom_call.1} parent=1 // pred_region
      _
    $region13: #{tpu_custom_call.1} parent=1 // pred_fallthru
      _
    // Predicated region
    $region14: #{tpu_custom_call.1} parent=1 // pred_check
      _
    $region15: #{tpu_custom_call.1} parent=1 // pred_check_branch
      %28 = sbr.rel (0) target = $region17
    $region16: #{tpu_custom_call.1} parent=1 // pred_region
      _
    $region17: #{tpu_custom_call.1} parent=1 // pred_fallthru
      _
    // Predicated region
    $region18: #{tpu_custom_call.1} parent=1 // pred_check
      _
    $region19: #{tpu_custom_call.1} parent=1 // pred_check_branch
      %30 = sbr.rel (0) target = $region21
    $region20: #{tpu_custom_call.1} parent=1 // pred_region
      _
    $region21: #{tpu_custom_call.1} parent=1 // pred_fallthru
      _
    // Predicated region
    $region22: #{tpu_custom_call.1} parent=1 // pred_check
      _
    $region23: #{tpu_custom_call.1} parent=1 // pred_check_branch
      %32 = sbr.rel (0) target = $region25
    $region24: #{tpu_custom_call.1} parent=1 // pred_region
      _
    $region25: #{tpu_custom_call.1} parent=1 // pred_fallthru
      _
    // Predicated region
    $region26: #{tpu_custom_call.1} parent=1 // pred_check
      _
    $region27: #{tpu_custom_call.1} parent=1 // pred_check_branch
      %34 = sbr.rel (0) target = $region29
    $region28: #{tpu_custom_call.1} parent=1 // pred_region
      %35 = dma.done [#allocation3], 256
    $region29: #{tpu_custom_call.1} parent=1 // pred_fallthru
      _
    %v36 = vld [vmem:[%s0] sm:$0xff]
    %v37 = vld [vmem:[%s0 + $0x8] sm:$0xff]
    %v38 = vld [vmem:[#allocation2] sm:$0xff]
    %v39 = vld [vmem:[#allocation2 + $0x8] sm:$0xff]
    %v40 = vld [vmem:[%s2] sm:$0xff]
    %42 = vset.pattern.permute.xlu0 0
    %43 = vperm.xlu0 %42, %v40
    %v44 = vpop.permute.xlu0 %43
    %v46 = vmul.f32 %v44, %v36
    %v47 = vmul.f32 %v44, %v37
    %v48 = vld [vmem:[%s3] sm:$0xff]
    %50 = vset.pattern.permute.xlu0 0
    %51 = vperm.xlu0 %50, %v48
    %v52 = vpop.permute.xlu0 %51
    %v54 = vmul.f32 %v52, %v38
    %v55 = vmul.f32 %v52, %v39
    %v56 = vadd.f32 %v46, %v54
    %v57 = vadd.f32 %v47, %v55
    %v58 = vld [vmem:[%s5] sm:$0xff]
    %v59 = vld [vmem:[%s4] sm:$0xff]
    %61 = vset.pattern.permute.xlu0 0
    %62 = vperm.xlu0 %61, %v59
    %v63 = vpop.permute.xlu0 %62
    %vm65 = vcmask 64512
    %v67 = vsel %vm65, %v58, 0
    %69 = vmatprep.subr.mxu0 0.0
    %70 = vmatpush1.msra.mxu0 0.0
    %71 = vmatprep.subr.mxu0 0.0
    %72 = vmatpush1.msra.mxu0 0.0
    %73 = vmatprep.subr.mxu0 0.0
    %74 = vmatpush1.msra.mxu0 0.0
    %75 = vmatprep.subr.mxu0 0.0
    %76 = vmatpush1.msra.mxu0 0.0
    %77 = vmatprep.subr.mxu0 0.0
    %78 = vmatpush1.msra.mxu0 0.0
    %79 = vmatprep.subr.mxu0 0.0
    %80 = vmatpush1.msra.mxu0 0.0
    %81 = vmatprep.subr.mxu0 0.0
    %82 = vmatpush1.msra.mxu0 0.0
    %83 = vmatprep.subr.mxu0 0.0
    %84 = vmatpush1.msra.mxu0 0.0
    %85 = vmatprep.subr.mxu0 0.0
    %86 = vmatpush1.msra.mxu0 0.0
    %87 = vmatprep.subr.mxu0 0.0
    %88 = vmatpush1.msra.mxu0 0.0
    %89 = vmatprep.subr.mxu0 0.0
    %90 = vmatpush1.msra.mxu0 0.0
    %91 = vmatprep.subr.mxu0 0.0
    %92 = vmatpush1.msra.mxu0 0.0
    %93 = vmatprep.subr.mxu0 0.0
    %94 = vmatpush1.msra.mxu0 0.0
    %95 = vmatprep.subr.mxu0 0.0
    %96 = vmatpush1.msra.mxu0 0.0
    %97 = vmatprep.subr.mxu0 0.0
    %98 = vmatpush1.msra.mxu0 0.0
    %99 = vmatprep.subr.mxu0 %v57
    %100 = vmatpush1.msra.mxu0 %v56
    %101 = vmatprep.subr.mxu0 0.0
    %102 = vmatpush2.msra.mxu0 0.0
    %103 = vmatprep.subr.mxu0 0.0
    %104 = vmatpush2.msra.mxu0 0.0
    %105 = vmatprep.subr.mxu0 0.0
    %106 = vmatpush2.msra.mxu0 0.0
    %107 = vmatprep.subr.mxu0 0.0
    %108 = vmatpush2.msra.mxu0 0.0
    %109 = vmatprep.subr.mxu0 0.0
    %110 = vmatpush2.msra.mxu0 0.0
    %111 = vmatprep.subr.mxu0 0.0
    %112 = vmatpush2.msra.mxu0 0.0
    %113 = vmatprep.subr.mxu0 0.0
    %114 = vmatpush2.msra.mxu0 0.0
    %115 = vmatprep.subr.mxu0 0.0
    %116 = vmatpush2.msra.mxu0 0.0
    %117 = vmatprep.subr.mxu0 0.0
    %118 = vmatpush2.msra.mxu0 0.0
    %119 = vmatprep.subr.mxu0 0.0
    %120 = vmatpush2.msra.mxu0 0.0
    %121 = vmatprep.subr.mxu0 0.0
    %122 = vmatpush2.msra.mxu0 0.0
    %123 = vmatprep.subr.mxu0 0.0
    %124 = vmatpush2.msra.mxu0 0.0
    %125 = vmatprep.subr.mxu0 0.0
    %126 = vmatpush2.msra.mxu0 0.0
    %127 = vmatprep.subr.mxu0 0.0
    %128 = vmatpush2.msra.mxu0 0.0
    %129 = vmatprep.subr.mxu0 0.0
    %130 = vmatpush2.msra.mxu0 0.0
    %131 = vmatprep.subr.mxu0 0.0
    %132 = vmatpush2.msra.mxu0 0.0
    %133 = vmatprep.mubr.f32.mxu0 0.0
    %134 = vmatmul.mubr.f32.gmra.mxu0 %v67
    %v135 = vpop.f32.mrf.mxu0
    %v136 = vadd.f32 %v63, %v135
    %v137 = vpop.f32.mrf.mxu0
    %v138 = vadd.f32 %v63, %v137
    %139 = vdwg.mxu0
    %v140 = vsub.f32 %v136, %v38
    %v141 = vsub.f32 %v138, %v39
    %v142 = vmul.f32 %v140, %v140
    %v143 = vmul.f32 %v141, %v141
    %144 = vst [vmem:[#allocation5] sm:$0xff] %v142
    %145 = vst [vmem:[#allocation5 + $0x8] sm:$0xff] %v143
    // Predicated region
    $region30: #{tpu_custom_call.1} parent=1 // pred_check
      _
    $region31: #{tpu_custom_call.1} parent=1 // pred_check_branch
      %147 = sbr.rel (0) target = $region33
    $region32: #{tpu_custom_call.1} parent=1 // pred_region
      %s149 = ssub.s32 256, 256
      %150 = vsyncadd [#allocation4], %s149
      %s152 = sshll.u32 [#allocation5], 4
      %s153 = int_to_ptr.vmem [resolvable:$true] %s152
      %155 = dma.vmem_to_hbm [thread:$0]  %s153, 256, %s6, [#allocation4]
    $region33: #{tpu_custom_call.1} parent=1 // pred_fallthru
      _
    // Predicated region
    $region34: #{tpu_custom_call.1} parent=1 // pred_check
      _
    $region35: #{tpu_custom_call.1} parent=1 // pred_check_branch
      %157 = sbr.rel (0) target = $region37
    $region36: #{tpu_custom_call.1} parent=1 // pred_region
      %158 = dma.done [#allocation4], 256
    $region37: #{tpu_custom_call.1} parent=1 // pred_fallthru
      _
    %159 = vsyncpa [#allocation3], 1
    %160 = vsyncpa [#allocation4], 1

</llo_original>
